<compile_context>
chip_gen: v7x
topology: tpu7x:2x2x1
jax: 0.10.0
libtpu: 0.0.40
codegen_flags: <defaults>
</compile_context>

<pallas_src>
import functools

import jax
import jax.numpy as jnp
from jax.experimental import pallas as pl
from jax.experimental.pallas import tpu as pltpu


def _ea_kernel(x_ref, wk_t_ref, wv_t_ref, o_ref, *, s_valid):
    # x_ref   : (tm, d_model)     tile of flattened queries (compute dtype)
    # wk_t_ref: (d_model, S_pad)  mk.weight^T, S zero-padded to a lane multiple
    # wv_t_ref: (S_pad, d_model)  mv.weight^T, S zero-padded to a lane multiple
    x = x_ref[...]

    # logits = x @ Wk^T  -> (tm, S_pad), f32 accumulation on the MXU.
    logits = jnp.dot(x, wk_t_ref[...], preferred_element_type=jnp.float32)

    # Mask the padded S lanes to -inf so they contribute 0 to the softmax.
    s_pad = logits.shape[-1]
    if s_valid < s_pad:
        col = jax.lax.broadcasted_iota(jnp.int32, logits.shape, 1)
        logits = jnp.where(col < s_valid, logits, -jnp.inf)

    # Numerically-stable softmax over S (f32).  The module's extra
    # "attn / attn.sum()" is the identity, so one normalization suffices.
    m = jnp.max(logits, axis=-1, keepdims=True)
    e = jnp.exp(logits - m)
    denom = jnp.sum(e, axis=-1, keepdims=True)                    # (tm, 1)
    p = e * pl.reciprocal(denom, approx=True)                     # (tm, S_pad)

    # out = softmax @ Wv^T  (padded S rows of Wv^T are zero; p there is 0).
    out = jnp.dot(p.astype(wv_t_ref.dtype), wv_t_ref[...],
                  preferred_element_type=jnp.float32)
    o_ref[...] = out.astype(o_ref.dtype)


def _choose_tm(M, d_model, S_pad, itemsize, tm_cap):
    """Row-tile size: 8-aligned, VMEM-aware, and >= 2 grid steps when possible."""
    # No point tiling past the (8-rounded) number of rows.
    tm = pl.cdiv(M, 8) * 8
    tm = min(tm, max(8, (tm_cap // 8) * 8))

    # Keep well under v7x's 64 MiB physical VMEM (budget ~24 MiB for blocks).
    budget = 24 * 1024 * 1024
    weights = 2 * 2 * d_model * S_pad * itemsize                  # dbl-buf Wk^T + Wv^T
    per_row = 2 * 2 * d_model * itemsize + 3 * S_pad * 4          # dbl-buf x & out + f32 temps
    fit = max(8, ((budget - weights) // per_row) // 8 * 8)
    tm = min(tm, fit)

    # v7x has two TensorCores: give the single "parallel" axis >= 2 steps.
    if pl.cdiv(M, tm) < 2 and M > 8:
        tm = max(8, pl.cdiv(pl.cdiv(M, 2), 8) * 8)
    return tm


def external_attention(queries, wk, wv, *, tm_cap=512, compute_dtype=None):
    """queries: (B, H, N, d_model); wk: (S, d_model); wv: (d_model, S).

    compute_dtype=jnp.bfloat16 is recommended for large (bandwidth-bound)
    shapes; the result is returned in the compute dtype.  On v6e/v5e, tm_cap
    may be raised to 1024 for a marginal gain (do not on v7x).
    """
    B, H, N, d_model = queries.shape
    S = wk.shape[0]
    M = B * H * N

    dt = jnp.dtype(compute_dtype) if compute_dtype is not None else queries.dtype
    x = queries.reshape(M, d_model).astype(dt)

    # Hoist weight transposes out of the kernel; pad S to a lane multiple
    # (tiny weight-only pad; padded lanes are masked in-kernel).
    wk_t = wk.T.astype(dt)        # (d_model, S)
    wv_t = wv.T.astype(dt)        # (S, d_model)
    S_pad = max(128, pl.cdiv(S, 128) * 128)
    if S_pad != S:
        wk_t = jnp.pad(wk_t, ((0, 0), (0, S_pad - S)))
        wv_t = jnp.pad(wv_t, ((0, S_pad - S), (0, 0)))

    itemsize = jnp.dtype(dt).itemsize
    tm = _choose_tm(M, d_model, S_pad, itemsize, tm_cap)
    grid = (pl.cdiv(M, tm),)      # partial final block handled by Pallas; no x pad / out slice

    # VMEM limit: ~2x the computed need, capped at 32 MiB (v7x-safe).
    vmem_need = (2 * 2 * d_model * S_pad * itemsize      # double-buffered Wk^T + Wv^T
                 + 2 * 2 * tm * d_model * itemsize       # double-buffered x tile + out tile
                 + 3 * tm * S_pad * 4)                   # f32 logits / e / p intermediates
    vmem_limit = int(min(32 * 1024 * 1024, max(8 * 1024 * 1024, 2 * vmem_need)))

    out_flat = pl.pallas_call(
        functools.partial(_ea_kernel, s_valid=S),
        out_shape=jax.ShapeDtypeStruct((M, d_model), dt),
        grid_spec=pltpu.PrefetchScalarGridSpec(
            num_scalar_prefetch=0,
            grid=grid,
            in_specs=[
                pl.BlockSpec((tm, d_model), lambda i: (i, 0)),     # x tile
                pl.BlockSpec((d_model, S_pad), lambda i: (0, 0)),  # Wk^T (full, constant index)
                pl.BlockSpec((S_pad, d_model), lambda i: (0, 0)),  # Wv^T (full, constant index)
            ],
            out_specs=pl.BlockSpec((tm, d_model), lambda i: (i, 0)),
        ),
        compiler_params=pltpu.CompilerParams(
            dimension_semantics=("parallel",),
            vmem_limit_bytes=vmem_limit,
        ),
    )(x, wk_t, wv_t)

    return out_flat.reshape(B, H, N, d_model)


def external_attention_ref(queries, wk, wv):
    attn = jnp.einsum("bhnd,sd->bhns", queries, wk)
    attn = jax.nn.softmax(attn, axis=3)
    attn = attn / jnp.sum(attn, axis=3, keepdims=True)
    return jnp.einsum("bhns,ds->bhnd", attn, wv)


if __name__ == "__main__":
    # Small shapes consistent with the module: 4-D input, features last.
    B, H, N = 2, 4, 8
    d_model, S = 32, 64

    key = jax.random.PRNGKey(0)
    kx, kwk, kwv = jax.random.split(key, 3)

    queries = jax.random.normal(kx, (B, H, N, d_model), dtype=jnp.float32)
    # nn.Linear weights initialized with init.normal_(std=0.001), no bias.
    wk = 0.001 * jax.random.normal(kwk, (S, d_model), dtype=jnp.float32)  # mk.weight
    wv = 0.001 * jax.random.normal(kwv, (d_model, S), dtype=jnp.float32)  # mv.weight

    out = external_attention(queries, wk, wv)
    out = jax.block_until_ready(out)

    ref = external_attention_ref(queries, wk, wv)
    assert out.shape == (B, H, N, d_model)
    assert jnp.allclose(out, ref, atol=1e-5, rtol=1e-5)

    # bf16 compute path (recommended for large, bandwidth-bound shapes).
    out_bf16 = jax.block_until_ready(
        external_attention(queries, wk, wv, compute_dtype=jnp.bfloat16))
    assert out_bf16.shape == (B, H, N, d_model)
    assert bool(jnp.all(jnp.isfinite(out_bf16.astype(jnp.float32))))

    print("KERNEL_OK")
</pallas_src>

<mosaic_0001>
module attributes {stable_mosaic.version = 11 : i64} {
  func.func @_ea_kernel(%arg0: i32, %arg1: memref<32x32xf32, #tpu.memory_space<vmem>>, %arg2: memref<32x128xf32, #tpu.memory_space<vmem>>, %arg3: memref<128x32xf32, #tpu.memory_space<vmem>>, %arg4: memref<32x32xf32, #tpu.memory_space<vmem>>) attributes {dimension_semantics = [#tpu.dimension_semantics<parallel>], iteration_bounds = array<i64: 2>, scalar_prefetch = 0 : i64, scratch_operands = 0 : i64, tpu.core_type = #tpu.core_type<tc>, window_params = [{transform_indices = @transform_0, window_bounds = array<i64: 32, 32>}, {pipeline_mode = #tpu.pipeline_mode<synchronous>, transform_indices = @transform_1, window_bounds = array<i64: 32, 128>}, {pipeline_mode = #tpu.pipeline_mode<synchronous>, transform_indices = @transform_2, window_bounds = array<i64: 128, 32>}, {transform_indices = @transform_3, window_bounds = array<i64: 32, 32>}]} {
    %c0 = arith.constant 0 : index
    %c0_0 = arith.constant 0 : index
    %0 = vector.load %arg1[%c0, %c0_0] : memref<32x32xf32, #tpu.memory_space<vmem>>, vector<32x32xf32>
    %c0_1 = arith.constant 0 : index
    %c0_2 = arith.constant 0 : index
    %1 = vector.load %arg2[%c0_1, %c0_2] : memref<32x128xf32, #tpu.memory_space<vmem>>, vector<32x128xf32>
    %cst = arith.constant dense<0.000000e+00> : vector<32x128xf32>
    %2 = tpu.matmul %0, %1, %cst {dimension_numbers = #tpu.dot_dimension_numbers<[1], [0], [0], [1], [0, 0, 1, 1], [], []>} : vector<32x32xf32>, vector<32x128xf32>, vector<32x128xf32> -> vector<32x128xf32>
    %3 = tpu.iota {dimensions = array<i32: 1>} : vector<32x128xi32>
    %c64_i32 = arith.constant 64 : i32
    %4 = vector.broadcast %c64_i32 : i32 to vector<32x128xi32>
    %5 = arith.cmpi slt, %3, %4 : vector<32x128xi32>
    %cst_3 = arith.constant 0xFF800000 : f32
    %6 = vector.broadcast %cst_3 : f32 to vector<32x128xf32>
    %7 = arith.select %5, %2, %6 : vector<32x128xi1>, vector<32x128xf32>
    %cst_4 = arith.constant dense<0xFF800000> : vector<32xf32>
    %8 = vector.multi_reduction <maximumf>, %7, %cst_4 [1] : vector<32x128xf32> to vector<32xf32>
    %9 = vector.shape_cast %8 : vector<32xf32> to vector<32x1xf32>
    %10 = vector.broadcast %9 : vector<32x1xf32> to vector<32x128xf32>
    %11 = arith.subf %7, %10 : vector<32x128xf32>
    %12 = math.exp %11 : vector<32x128xf32>
    %cst_5 = arith.constant dense<0.000000e+00> : vector<32xf32>
    %13 = vector.multi_reduction <add>, %12, %cst_5 [1] : vector<32x128xf32> to vector<32xf32>
    %14 = vector.shape_cast %13 : vector<32xf32> to vector<32x1xf32>
    %15 = tpu.reciprocal %14 {approx = true} : vector<32x1xf32> -> vector<32x1xf32>
    %16 = vector.broadcast %15 : vector<32x1xf32> to vector<32x128xf32>
    %17 = arith.mulf %12, %16 : vector<32x128xf32>
    %c0_6 = arith.constant 0 : index
    %c0_7 = arith.constant 0 : index
    %18 = vector.load %arg3[%c0_6, %c0_7] : memref<128x32xf32, #tpu.memory_space<vmem>>, vector<128x32xf32>
    %cst_8 = arith.constant dense<0.000000e+00> : vector<32x32xf32>
    %19 = tpu.matmul %17, %18, %cst_8 {dimension_numbers = #tpu.dot_dimension_numbers<[1], [0], [0], [1], [0, 0, 1, 1], [], []>} : vector<32x128xf32>, vector<128x32xf32>, vector<32x32xf32> -> vector<32x32xf32>
    %c0_9 = arith.constant 0 : index
    %c0_10 = arith.constant 0 : index
    %20 = vector.load %arg4[%c0_9, %c0_10] : memref<32x32xf32, #tpu.memory_space<vmem>>, vector<32x32xf32>
    tpu.vector_store %arg4[%c0_9, %c0_10], %19 {strides = array<i32>} : memref<32x32xf32, #tpu.memory_space<vmem>>, vector<32x32xf32>,
    return
  }
  func.func @transform_0(%arg0: i32) -> (i32, i32) {
    %c0_i32 = arith.constant 0 : i32
    %c0_i32_0 = arith.constant 0 : i32
    return %arg0, %c0_i32 : i32, i32
  }
  func.func @transform_1(%arg0: i32) -> (i32, i32) {
    %c0_i32 = arith.constant 0 : i32
    %c0_i32_0 = arith.constant 0 : i32
    %c0_i32_1 = arith.constant 0 : i32
    return %c0_i32, %c0_i32_0 : i32, i32
  }
  func.func @transform_2(%arg0: i32) -> (i32, i32) {
    %c0_i32 = arith.constant 0 : i32
    %c0_i32_0 = arith.constant 0 : i32
    %c0_i32_1 = arith.constant 0 : i32
    return %c0_i32, %c0_i32_0 : i32, i32
  }
  func.func @transform_3(%arg0: i32) -> (i32, i32) {
    %c0_i32 = arith.constant 0 : i32
    %c0_i32_0 = arith.constant 0 : i32
    return %arg0, %c0_i32 : i32, i32
  }
}

</mosaic_0001>

<llo_original>
// kernel: tpu_custom_call.1
$region0: #{tpu_custom_call.1}
  #allocation0 [shape = 'u32[]', space=smem, size = 0x4, offset = 0x4, fixed_abs, tag = 'smem constant byte address 0x4 - core index']
  #allocation1 [shape = 'u32[144,128]{1,0:T(1,128)}', space=vmem, size = 0x12000, scoped, tag = 'internal scratch']
  %s0 = inlined_call_operand.vmem [shape: f32[64,32], index: 0, kind: input, shape index: {}]
  %s1 = inlined_call_operand.vmem [shape: f32[32,128], index: 1, kind: input, shape index: {}]
  %s2 = inlined_call_operand.vmem [shape: f32[128,32], index: 2, kind: input, shape index: {}]
  %s3 = inlined_call_operand.vmem [shape: f32[64,32], index: 3, kind: output, shape index: {}]
  %s4 = sld [smem:[#allocation0]]
  $region45: #{tpu_custom_call.1} parent=0
    _
  %s6 = ssub.s32 1, %s4
  %s7 = scalar_select 0, %s6, %s4
  loop: start=0, step=1, limit=4
  $region2: #{tpu_custom_call.1} parent=0 // loop_pre_header
    _
  $region3: #{tpu_custom_call.1} parent=0 // loop_header
    %s9 = sphi 0, %s13
    %p10 = scmp.ge.s32.totalorder %s9, 4
    %s19 = sphi 0, %s21
    %s22 = sphi 0, %s19
    %s23 = sphi 0, %s22
    %s39 = sphi 0, %s23
    %s43 = sphi 0, %s43
    %s45 = sphi 0, %s43
    %s46 = sphi 0, %s45
    %s60 = sphi 0, %s46
    %s64 = sphi 0, %s64
    %s66 = sphi 0, %s64
    %s67 = sphi 0, %s66
    %s81 = sphi 0, %s67
    %s87 = sphi 0, %s89
    %s90 = sphi 0, %s87
    %s91 = sphi 0, %s90
    %s107 = sphi 0, %s91
  $region4: #{tpu_custom_call.1} parent=0 // loop_header_branch
    %12 = sbr.rel (%p10) target = $region8
  $region5: #{tpu_custom_call.1} parent=0 // loop_body
    %s14 = ssub.s32 %s9, 1
    %s15 = ssub.s32 %s9, 2
    %s16 = sadd.s32 %s9, 1
    %s17 = ssub.s32 %s9, %s16
    %p18 = scmp.eq.s32.totalorder %s17, 0
    %s20 = sadd.s32 %s19, 1
    %s21 = scalar_select %p18, %s19, %s20
    %p24 = pneg %p18
    %p25 = scmp.eq.s32.totalorder %s9, 1
    %p26 = por %p24, %p25
    %p27 = scmp.ne.s32.totalorder %s19, %s22
    %p28 = scmp.eq.s32.totalorder %s9, 0
    %p29 = por %p27, %p28
    %p30 = scmp.ne.s32.totalorder %s19, %s22
    %p31 = scmp.eq.s32.totalorder %s14, 1
    %p32 = por %p30, %p31
    %p33 = scmp.ne.s32.totalorder %s22, %s23
    %p34 = scmp.eq.s32.totalorder %s14, 0
    %p35 = por %p33, %p34
    %p36 = scmp.ne.s32.totalorder %s22, %s23
    %p37 = scmp.eq.s32.totalorder %s15, 1
    %p38 = por %p36, %p37
    %p40 = scmp.ne.s32.totalorder %s23, %s39
    %p41 = scmp.eq.s32.totalorder %s15, 0
    %p42 = por %p40, %p41
    %s44 = sadd.s32 %s43, 1
    %p47 = scmp.eq.s32.totalorder %s9, 1
    %p48 = scmp.ne.s32.totalorder %s43, %s45
    %p49 = scmp.eq.s32.totalorder %s9, 0
    %p50 = por %p48, %p49
    %p51 = scmp.ne.s32.totalorder %s43, %s45
    %p52 = scmp.eq.s32.totalorder %s14, 1
    %p53 = por %p51, %p52
    %p54 = scmp.ne.s32.totalorder %s45, %s46
    %p55 = scmp.eq.s32.totalorder %s14, 0
    %p56 = por %p54, %p55
    %p57 = scmp.ne.s32.totalorder %s45, %s46
    %p58 = scmp.eq.s32.totalorder %s15, 1
    %p59 = por %p57, %p58
    %p61 = scmp.ne.s32.totalorder %s46, %s60
    %p62 = scmp.eq.s32.totalorder %s15, 0
    %p63 = por %p61, %p62
    %s65 = sadd.s32 %s64, 1
    %p68 = scmp.eq.s32.totalorder %s9, 1
    %p69 = scmp.ne.s32.totalorder %s64, %s66
    %p70 = scmp.eq.s32.totalorder %s9, 0
    %p71 = por %p69, %p70
    %p72 = scmp.ne.s32.totalorder %s64, %s66
    %p73 = scmp.eq.s32.totalorder %s14, 1
    %p74 = por %p72, %p73
    %p75 = scmp.ne.s32.totalorder %s66, %s67
    %p76 = scmp.eq.s32.totalorder %s14, 0
    %p77 = por %p75, %p76
    %p78 = scmp.ne.s32.totalorder %s66, %s67
    %p79 = scmp.eq.s32.totalorder %s15, 1
    %p80 = por %p78, %p79
    %p82 = scmp.ne.s32.totalorder %s67, %s81
    %p83 = scmp.eq.s32.totalorder %s15, 0
    %p84 = por %p82, %p83
    %s85 = ssub.s32 %s9, %s16
    %p86 = scmp.eq.s32.totalorder %s85, 0
    %s88 = sadd.s32 %s87, 1
    %s89 = scalar_select %p86, %s87, %s88
    %p92 = pneg %p86
    %p93 = scmp.eq.s32.totalorder %s9, 1
    %p94 = por %p92, %p93
    %p95 = scmp.ne.s32.totalorder %s87, %s90
    %p96 = scmp.eq.s32.totalorder %s9, 0
    %p97 = por %p95, %p96
    %p98 = scmp.ne.s32.totalorder %s87, %s90
    %p99 = scmp.eq.s32.totalorder %s14, 1
    %p100 = por %p98, %p99
    %p101 = scmp.ne.s32.totalorder %s90, %s91
    %p102 = scmp.eq.s32.totalorder %s14, 0
    %p103 = por %p101, %p102
    %p104 = scmp.ne.s32.totalorder %s90, %s91
    %p105 = scmp.eq.s32.totalorder %s15, 1
    %p106 = por %p104, %p105
    %p108 = scmp.ne.s32.totalorder %s91, %s107
    %p109 = scmp.eq.s32.totalorder %s15, 0
    %p110 = por %p108, %p109
    %p111 = scmp.le.s32.totalorder 1, %s9
    %p112 = scmp.lt.s32.totalorder %s9, 3
    %p113 = pnand %p111, %p112
    %p114 = pneg %p113
    // Predicated region
    $region9: #{tpu_custom_call.1} parent=5 // pred_check
      _
    $region10: #{tpu_custom_call.1} parent=5 // pred_check_branch
      %116 = sbr.rel (%p113) target = $region12
    $region11: #{tpu_custom_call.1} parent=5 // pred_region
      %s117 = ssub.s32 %s9, 1
      // Predicated region
      $region13: #{tpu_custom_call.1} parent=11 // pred_check
        %p118 = pneg %p56
      $region14: #{tpu_custom_call.1} parent=11 // pred_check_branch
        %120 = sbr.rel (%p118) target = $region16
      $region15: #{tpu_custom_call.1} parent=11 // pred_region
        _
      $region16: #{tpu_custom_call.1} parent=11 // pred_fallthru
        _
      // Predicated region
      $region17: #{tpu_custom_call.1} parent=11 // pred_check
        %p121 = pneg %p77
      $region18: #{tpu_custom_call.1} parent=11 // pred_check_branch
        %123 = sbr.rel (%p121) target = $region20
      $region19: #{tpu_custom_call.1} parent=11 // pred_region
        _
      $region20: #{tpu_custom_call.1} parent=11 // pred_fallthru
        _
    $region12: #{tpu_custom_call.1} parent=5 // pred_fallthru
      _
    %p124 = scmp.lt.s32.totalorder %s9, 2
    // Predicated region
    $region21: #{tpu_custom_call.1} parent=5 // pred_check
      %p125 = pneg %p124
    $region22: #{tpu_custom_call.1} parent=5 // pred_check_branch
      %127 = sbr.rel (%p125) target = $region24
    $region23: #{tpu_custom_call.1} parent=5 // pred_region
      // Predicated region
      $region25: #{tpu_custom_call.1} parent=23 // pred_check
        %p128 = pneg %p29
      $region26: #{tpu_custom_call.1} parent=23 // pred_check_branch
        %130 = sbr.rel (%p128) target = $region28
      $region27: #{tpu_custom_call.1} parent=23 // pred_region
        %s131 = smul.u32 4, %s9
        %p132 = scmp.lt.s32.totalorder %s131, 7
        %s133 = scalar_select %p132, %s131, 7
        %s134 = smul.addr %s133, 8
        %s135 = scalar_lea.vmem %s0, %s134
        %s136 = smul.u32 4, %s9
      $region28: #{tpu_custom_call.1} parent=23 // pred_fallthru
        _
    $region24: #{tpu_custom_call.1} parent=5 // pred_fallthru
      _
    %p137 = scmp.le.s32.totalorder 1, %s9
    %p138 = scmp.lt.s32.totalorder %s9, 3
    %p139 = pnand %p137, %p138
    %p140 = pneg %p139
    // Predicated region
    $region29: #{tpu_custom_call.1} parent=5 // pred_check
      _
    $region30: #{tpu_custom_call.1} parent=5 // pred_check_branch
      %142 = sbr.rel (%p139) target = $region32
    $region31: #{tpu_custom_call.1} parent=5 // pred_region
      %s143 = ssub.s32 %s9, 1
      %s144 = smul.u32 4, %s14
      %p145 = scmp.lt.s32.totalorder %s144, 7
      %s146 = scalar_select %p145, %s144, 7
      %s147 = smul.addr %s146, 8
      %s148 = scalar_lea.vmem %s0, %s147
      %p149 = pneg %p35
      %p150 = pneg %p32
      %p151 = pneg %p56
      %p152 = pneg %p53
      %p153 = pneg %p77
      %p154 = pneg %p74
      %p155 = pneg %p103
      %p156 = pneg %p100
      %s157 = smul.u32 4, %s14
      %p158 = scmp.lt.s32.totalorder %s157, 7
      %s159 = scalar_select %p158, %s157, 7
      %s160 = smul.addr %s159, 8
      %s161 = scalar_lea.vmem %s3, %s160
      %s162 = smul.u32 4, %s14
      %p163 = scmp.lt.s32.totalorder %s162, 7
      %s164 = scalar_select %p163, %s162, 7
      %s165 = smul.addr %s164, 8
      %s166 = scalar_lea.vmem %s0, %s165
      %s167 = smul.u32 4, %s14
      %s168 = smul.u32 4, %s14
      %p169 = scmp.lt.s32.totalorder %s168, 7
      %s170 = scalar_select %p169, %s168, 7
      %s171 = smul.addr %s170, 8
      %s172 = scalar_lea.vmem %s3, %s171
      %s173 = smul.u32 4, %s14
      %v174 = vld [vmem:[%s166] sm:$0xff]
      %v175 = vld [vmem:[%s166 + $0x8] sm:$0xff]
      %v176 = vld [vmem:[%s166 + $0x10] sm:$0xff]
      %v177 = vld [vmem:[%s166 + $0x18] sm:$0xff]
      %v178 = vld [vmem:[%s1] sm:$0xff]
      %v179 = vld [vmem:[%s1 + $0x8] sm:$0xff]
      %v180 = vld [vmem:[%s1 + $0x10] sm:$0xff]
      %v181 = vld [vmem:[%s1 + $0x18] sm:$0xff]
      %vm182 = vcmask 261120
      %v184 = vsel %vm182, %v174, 0
      %v187 = vsel %vm182, %v175, 0
      %v190 = vsel %vm182, %v176, 0
      %v193 = vsel %vm182, %v177, 0
      %195 = vmatprep.subr.mxu0 0.0
      %196 = vmatpush1.msra.mxu0 %v178
      %197 = vmatprep.subr.mxu0 0.0
      %198 = vmatpush1.msra.mxu0 %v179
      %199 = vmatprep.subr.mxu0 0.0
      %200 = vmatpush1.msra.mxu0 %v180
      %201 = vmatprep.subr.mxu0 0.0
      %202 = vmatpush1.msra.mxu0 %v181
      %203 = vmatprep.subr.mxu0 0.0
      %204 = vmatpush1.msra.mxu0 0.0
      %205 = vmatprep.subr.mxu0 0.0
      %206 = vmatpush1.msra.mxu0 0.0
      %207 = vmatprep.subr.mxu0 0.0
      %208 = vmatpush1.msra.mxu0 0.0
      %209 = vmatprep.subr.mxu0 0.0
      %210 = vmatpush1.msra.mxu0 0.0
      %211 = vmatprep.subr.mxu0 0.0
      %212 = vmatpush1.msra.mxu0 0.0
      %213 = vmatprep.subr.mxu0 0.0
      %214 = vmatpush1.msra.mxu0 0.0
      %215 = vmatprep.subr.mxu0 0.0
      %216 = vmatpush1.msra.mxu0 0.0
      %217 = vmatprep.subr.mxu0 0.0
      %218 = vmatpush1.msra.mxu0 0.0
      %219 = vmatprep.subr.mxu0 0.0
      %220 = vmatpush1.msra.mxu0 0.0
      %221 = vmatprep.subr.mxu0 0.0
      %222 = vmatpush1.msra.mxu0 0.0
      %223 = vmatprep.subr.mxu0 0.0
      %224 = vmatpush1.msra.mxu0 0.0
      %225 = vmatprep.subr.mxu0 0.0
      %226 = vmatpush1.msra.mxu0 0.0
      %227 = vmatprep.subr.mxu0 0.0
      %228 = vmatpush1.msra.mxu0 0.0
      %229 = vmatprep.subr.mxu0 0.0
      %230 = vmatpush1.msra.mxu0 0.0
      %231 = vmatprep.subr.mxu0 0.0
      %232 = vmatpush1.msra.mxu0 0.0
      %233 = vmatprep.subr.mxu0 0.0
      %234 = vmatpush1.msra.mxu0 0.0
      %235 = vmatprep.subr.mxu0 0.0
      %236 = vmatpush1.msra.mxu0 0.0
      %237 = vmatprep.subr.mxu0 0.0
      %238 = vmatpush1.msra.mxu0 0.0
      %239 = vmatprep.subr.mxu0 0.0
      %240 = vmatpush1.msra.mxu0 0.0
      %241 = vmatprep.subr.mxu0 0.0
      %242 = vmatpush1.msra.mxu0 0.0
      %243 = vmatprep.subr.mxu0 0.0
      %244 = vmatpush1.msra.mxu0 0.0
      %245 = vmatprep.subr.mxu0 0.0
      %246 = vmatpush1.msra.mxu0 0.0
      %247 = vmatprep.subr.mxu0 0.0
      %248 = vmatpush1.msra.mxu0 0.0
      %249 = vmatprep.subr.mxu0 0.0
      %250 = vmatpush1.msra.mxu0 0.0
      %251 = vmatprep.subr.mxu0 0.0
      %252 = vmatpush1.msra.mxu0 0.0
      %253 = vmatprep.subr.mxu0 0.0
      %254 = vmatpush1.msra.mxu0 0.0
      %255 = vmatprep.subr.mxu0 0.0
      %256 = vmatpush1.msra.mxu0 0.0
      %257 = vmatprep.subr.mxu0 0.0
      %258 = vmatpush1.msra.mxu0 0.0
      %259 = vmatprep.mubr.f32.mxu0 0.0
      %260 = vmatmul.mubr.f32.gmra.mrb[0].mxu0 %v184
      %v261 = vpop.f32.mrb[0].mxu0
      %v262 = vadd.f32 0.0, %v261
      %v263 = vpop.f32.mrb[0].mxu0
      %264 = vmatprep.mubr.f32.mxu0 0.0
      %265 = vmatmul.mubr.f32.gmra.mrb[0].mxu0 %v187
      %v266 = vpop.f32.mrb[0].mxu0
      %v267 = vadd.f32 0.0, %v266
      %v268 = vpop.f32.mrb[0].mxu0
      %269 = vmatprep.mubr.f32.mxu0 0.0
      %270 = vmatmul.mubr.f32.gmra.mrb[0].mxu0 %v190
      %v271 = vpop.f32.mrb[0].mxu0
      %v272 = vadd.f32 0.0, %v271
      %v273 = vpop.f32.mrb[0].mxu0
      %274 = vmatprep.mubr.f32.mxu0 0.0
      %275 = vmatmul.mubr.f32.gmra.mrb[0].mxu0 %v193
      %v276 = vpop.f32.mrb[0].mxu0
      %v277 = vadd.f32 0.0, %v276
      %v278 = vpop.f32.mrb[0].mxu0
      %279 = vdwg.mxu0
      %v280 = vlaneseq
      %v281 = vand.u32 %v280, 127
      %vm282 = vcmp.lt.s32.totalorder %v281, 64
      %v283 = vsel %vm282, %v262, -inf
      %v284 = vsel %vm282, %v267, -inf
      %v285 = vsel %vm282, %v272, -inf
      %v286 = vsel %vm282, %v277, -inf
      %287 = vmax.xlane.f32.xlu0 %v283
      %v288 = vpop.xlane.xlu0 %287
      %289 = vmax.xlane.f32.xlu0 %v284
      %v290 = vpop.xlane.xlu0 %289
      %291 = vmax.xlane.f32.xlu0 %v285
      %v292 = vpop.xlane.xlu0 %291
      %293 = vmax.xlane.f32.xlu0 %v286
      %v294 = vpop.xlane.xlu0 %293
      %v295 = vsub.f32 %v283, %v288
      %v296 = vsub.f32 %v284, %v290
      %v297 = vsub.f32 %v285, %v292
      %v298 = vsub.f32 %v286, %v294
      %v299 = vmul.f32 %v295, 1.442695
      %v300 = vpow.pop %v299
      %v301 = vmul.f32 %v296, 1.442695
      %v302 = vpow.pop %v301
      %v303 = vmul.f32 %v297, 1.442695
      %v304 = vpow.pop %v303
      %v305 = vmul.f32 %v298, 1.442695
      %v306 = vpow.pop %v305
      %307 = vadd.xlane.f32.xlu0 %v300
      %v308 = vpop.xlane.xlu0 %307
      %309 = vadd.xlane.f32.xlu0 %v302
      %v310 = vpop.xlane.xlu0 %309
      %311 = vadd.xlane.f32.xlu0 %v304
      %v312 = vpop.xlane.xlu0 %311
      %313 = vadd.xlane.f32.xlu0 %v306
      %v314 = vpop.xlane.xlu0 %313
      %v315 = vrcp.pop %v308
      %v316 = vrcp.pop %v310
      %v317 = vrcp.pop %v312
      %v318 = vrcp.pop %v314
      %v319 = vmul.f32 %v300, %v315
      %v320 = vmul.f32 %v302, %v316
      %v321 = vmul.f32 %v304, %v317
      %v322 = vmul.f32 %v306, %v318
      %v323 = vld [vmem:[%s2] sm:$0xff]
      %v324 = vld [vmem:[%s2 + $0x8] sm:$0xff]
      %v325 = vld [vmem:[%s2 + $0x10] sm:$0xff]
      %v326 = vld [vmem:[%s2 + $0x18] sm:$0xff]
      %v327 = vld [vmem:[%s2 + $0x20] sm:$0xff]
      %v328 = vld [vmem:[%s2 + $0x28] sm:$0xff]
      %v329 = vld [vmem:[%s2 + $0x30] sm:$0xff]
      %v330 = vld [vmem:[%s2 + $0x38] sm:$0xff]
      %v331 = vld [vmem:[%s2 + $0x40] sm:$0xff]
      %v332 = vld [vmem:[%s2 + $0x48] sm:$0xff]
      %v333 = vld [vmem:[%s2 + $0x50] sm:$0xff]
      %v334 = vld [vmem:[%s2 + $0x58] sm:$0xff]
      %v335 = vld [vmem:[%s2 + $0x60] sm:$0xff]
      %v336 = vld [vmem:[%s2 + $0x68] sm:$0xff]
      %v337 = vld [vmem:[%s2 + $0x70] sm:$0xff]
      %v338 = vld [vmem:[%s2 + $0x78] sm:$0xff]
      %339 = vmatprep.subr.mxu0 0.0
      %340 = vmatpush1.msra.mxu0 %v323
      %341 = vmatprep.subr.mxu0 0.0
      %342 = vmatpush1.msra.mxu0 %v324
      %343 = vmatprep.subr.mxu0 0.0
      %344 = vmatpush1.msra.mxu0 %v325
      %345 = vmatprep.subr.mxu0 0.0
      %346 = vmatpush1.msra.mxu0 %v326
      %347 = vmatprep.subr.mxu0 0.0
      %348 = vmatpush1.msra.mxu0 %v327
      %349 = vmatprep.subr.mxu0 0.0
      %350 = vmatpush1.msra.mxu0 %v328
      %351 = vmatprep.subr.mxu0 0.0
      %352 = vmatpush1.msra.mxu0 %v329
      %353 = vmatprep.subr.mxu0 0.0
      %354 = vmatpush1.msra.mxu0 %v330
      %355 = vmatprep.subr.mxu0 0.0
      %356 = vmatpush1.msra.mxu0 %v331
      %357 = vmatprep.subr.mxu0 0.0
      %358 = vmatpush1.msra.mxu0 %v332
      %359 = vmatprep.subr.mxu0 0.0
      %360 = vmatpush1.msra.mxu0 %v333
      %361 = vmatprep.subr.mxu0 0.0
      %362 = vmatpush1.msra.mxu0 %v334
      %363 = vmatprep.subr.mxu0 0.0
      %364 = vmatpush1.msra.mxu0 %v335
      %365 = vmatprep.subr.mxu0 0.0
      %366 = vmatpush1.msra.mxu0 %v336
      %367 = vmatprep.subr.mxu0 0.0
      %368 = vmatpush1.msra.mxu0 %v337
      %369 = vmatprep.subr.mxu0 0.0
      %370 = vmatpush1.msra.mxu0 %v338
      %371 = vmatprep.subr.mxu0 0.0
      %372 = vmatpush1.msra.mxu0 0.0
      %373 = vmatprep.subr.mxu0 0.0
      %374 = vmatpush1.msra.mxu0 0.0
      %375 = vmatprep.subr.mxu0 0.0
      %376 = vmatpush1.msra.mxu0 0.0
      %377 = vmatprep.subr.mxu0 0.0
      %378 = vmatpush1.msra.mxu0 0.0
      %379 = vmatprep.subr.mxu0 0.0
      %380 = vmatpush1.msra.mxu0 0.0
      %381 = vmatprep.subr.mxu0 0.0
      %382 = vmatpush1.msra.mxu0 0.0
      %383 = vmatprep.subr.mxu0 0.0
      %384 = vmatpush1.msra.mxu0 0.0
      %385 = vmatprep.subr.mxu0 0.0
      %386 = vmatpush1.msra.mxu0 0.0
      %387 = vmatprep.subr.mxu0 0.0
      %388 = vmatpush1.msra.mxu0 0.0
      %389 = vmatprep.subr.mxu0 0.0
      %390 = vmatpush1.msra.mxu0 0.0
      %391 = vmatprep.subr.mxu0 0.0
      %392 = vmatpush1.msra.mxu0 0.0
      %393 = vmatprep.subr.mxu0 0.0
      %394 = vmatpush1.msra.mxu0 0.0
      %395 = vmatprep.subr.mxu0 0.0
      %396 = vmatpush1.msra.mxu0 0.0
      %397 = vmatprep.subr.mxu0 0.0
      %398 = vmatpush1.msra.mxu0 0.0
      %399 = vmatprep.subr.mxu0 0.0
      %400 = vmatpush1.msra.mxu0 0.0
      %401 = vmatprep.subr.mxu0 0.0
      %402 = vmatpush1.msra.mxu0 0.0
      %403 = vmatprep.mubr.f32.mxu0 0.0
      %404 = vmatmul.mubr.f32.gmra.mrb[0].mxu0 %v319
      %v405 = vpop.f32.mrb[0].mxu0
      %v406 = vadd.f32 0.0, %v405
      %v407 = vpop.f32.mrb[0].mxu0
      %408 = vmatprep.mubr.f32.mxu0 0.0
      %409 = vmatmul.mubr.f32.gmra.mrb[0].mxu0 %v320
      %v410 = vpop.f32.mrb[0].mxu0
      %v411 = vadd.f32 0.0, %v410
      %v412 = vpop.f32.mrb[0].mxu0
      %413 = vmatprep.mubr.f32.mxu0 0.0
      %414 = vmatmul.mubr.f32.gmra.mrb[0].mxu0 %v321
      %v415 = vpop.f32.mrb[0].mxu0
      %v416 = vadd.f32 0.0, %v415
      %v417 = vpop.f32.mrb[0].mxu0
      %418 = vmatprep.mubr.f32.mxu0 0.0
      %419 = vmatmul.mubr.f32.gmra.mrb[0].mxu0 %v322
      %v420 = vpop.f32.mrb[0].mxu0
      %v421 = vadd.f32 0.0, %v420
      %v422 = vpop.f32.mrb[0].mxu0
      %423 = vdwg.mxu0
      %424 = vst.msk [vmem:[%s172] sm:$0xff] %vm182, %v406
      %425 = vst.msk [vmem:[%s172 + $0x8] sm:$0xff] %vm182, %v411
      %426 = vst.msk [vmem:[%s172 + $0x10] sm:$0xff] %vm182, %v416
      %427 = vst.msk [vmem:[%s172 + $0x18] sm:$0xff] %vm182, %v421
      %s428 = smul.u32 4, %s14
      %p429 = scmp.lt.s32.totalorder %s428, 7
      %s430 = scalar_select %p429, %s428, 7
      %s431 = smul.addr %s430, 8
      %s432 = scalar_lea.vmem %s3, %s431
      // Predicated region
      $region33: #{tpu_custom_call.1} parent=31 // pred_check
        %p433 = pneg %p100
      $region34: #{tpu_custom_call.1} parent=31 // pred_check_branch
        %435 = sbr.rel (%p433) target = $region36
      $region35: #{tpu_custom_call.1} parent=31 // pred_region
        %s436 = smul.u32 4, %s14
      $region36: #{tpu_custom_call.1} parent=31 // pred_fallthru
        _
    $region32: #{tpu_custom_call.1} parent=5 // pred_fallthru
      _
    %p437 = scmp.le.s32.totalorder 2, %s9
    // Predicated region
    $region37: #{tpu_custom_call.1} parent=5 // pred_check
      %p438 = pneg %p437
    $region38: #{tpu_custom_call.1} parent=5 // pred_check_branch
      %440 = sbr.rel (%p438) target = $region40
    $region39: #{tpu_custom_call.1} parent=5 // pred_region
      %s441 = ssub.s32 %s9, 2
      // Predicated region
      $region41: #{tpu_custom_call.1} parent=39 // pred_check
        %p442 = pneg %p106
      $region42: #{tpu_custom_call.1} parent=39 // pred_check_branch
        %444 = sbr.rel (%p442) target = $region44
      $region43: #{tpu_custom_call.1} parent=39 // pred_region
        %s445 = smul.u32 4, %s15
        %p446 = scmp.lt.s32.totalorder %s445, 7
        %s447 = scalar_select %p446, %s445, 7
        %s448 = smul.addr %s447, 8
        %s449 = scalar_lea.vmem %s3, %s448
      $region44: #{tpu_custom_call.1} parent=39 // pred_fallthru
        _
    $region40: #{tpu_custom_call.1} parent=5 // pred_fallthru
      _
  $region6: #{tpu_custom_call.1} parent=0 // loop_footer
    %s13 = sadd.s32 1, %s9
  $region7: #{tpu_custom_call.1} parent=0 // loop_footer_branch
    %8 = sbr.rel target = $region3
  $region8: #{tpu_custom_call.1} parent=0 // loop_exit
    _

</llo_original>
